<compile_context>
chip_gen: v7x
topology: tpu7x:2x2x1
jax: 0.10.0
libtpu: 0.0.40
codegen_flags: <defaults>
</compile_context>

<pallas_src>
import functools

import jax
import jax.numpy as jnp
from jax import lax
from jax.experimental import pallas as pl
from jax.experimental.pallas import tpu as pltpu


# ---------------------------------------------------------------------------
# Fused kernel: conv3x3 -> ReLU -> conv3x3 -> per-image/channel gate
# Grid: (n_steps,), one stacked slab of bpr images per step. Merged (rows, W*C) layout.
# ---------------------------------------------------------------------------
def _fused_kernel(ad_ref, big0_ref, big1_ref, x_ref, o_ref, *, H, bpr):
    """Per-step shapes:
      ad_ref   : (1, bpr, WC)  f32   gate row per image, pre-tiled over W
      big*_ref : (3*WC, WC)    bf16  folded block-Toeplitz conv weights, dy-stacked on K
      x_ref    : (1, M, WC)    f32   bpr images stacked along rows, M = bpr*H
      o_ref    : (1, M, WC)    f32
    """
    M = bpr * H
    WC = x_ref.shape[-1]
    x = x_ref[0]                                                    # (M, WC) f32

    # Per-image row masks: row i is first / last row of its image iff i % H == 0 / H-1.
    r = lax.broadcasted_iota(jnp.int32, (M, WC), 0) % H
    has_above = r != 0
    has_below = r != (H - 1)

    def conv3x3(v, big_ref):
        # +-1 row shifts via sublane roll (XLU) + boundary zeroing: gives SAME padding
        # along H and prevents bleed between stacked images. The W-direction (dx) taps
        # and W-padding live inside the block-Toeplitz weights.
        up = jnp.where(has_above, pltpu.roll(v, 1, 0), 0.0)         # v[h-1]
        dn = jnp.where(has_below, pltpu.roll(v, M - 1, 0), 0.0)     # v[h+1]
        lhs = jnp.concatenate([up, v, dn], axis=-1).astype(jnp.bfloat16)   # (M, 3*WC)
        # single K=3*WC MXU matmul, f32 accumulation
        return jnp.dot(lhs, big_ref[...], preferred_element_type=jnp.float32)

    h = jnp.maximum(conv3x3(x, big0_ref), 0.0)                      # conv0 + ReLU (f32)
    t = conv3x3(h, big1_ref)                                        # conv1        (f32)

    # Per-image gate: broadcast each image's (1, WC) gate row over its H rows.
    ad = ad_ref[0]                                                  # (bpr, WC) f32
    scale = jnp.concatenate(
        [jnp.broadcast_to(ad[i:i + 1, :], (H, WC)) for i in range(bpr)], axis=0)
    o_ref[0] = (t * scale).astype(o_ref.dtype)                      # tuning_f * ad_alpha


# ---------------------------------------------------------------------------
# Static weight folding (wrapper-side, pure parameter preprocessing)
# ---------------------------------------------------------------------------
def _fold_conv_weight(w_hwio, W):
    """(3,3,C,C) HWIO conv weight -> (3*W*C, W*C) dy-stacked block-Toeplitz matrix.

    Block (w_in, w_out) of dy-row dy holds w[dy, dx, :, :] where w_in = w_out + dx - 1
    (out-of-range w_in blocks are absent => zero padding along W for free).
    """
    C = w_hwio.shape[-1]
    mats = []
    for dy in range(3):
        m = jnp.zeros((W * C, W * C), jnp.float32)
        for dx in range(3):
            sel = jnp.eye(W, k=1 - dx, dtype=jnp.float32)           # w_in == w_out + dx - 1
            m = m + jnp.kron(sel, w_hwio[dy, dx].astype(jnp.float32))
        mats.append(m)
    return jnp.concatenate(mats, axis=0)                            # rows: [dy=0|dy=1|dy=2]


# ---------------------------------------------------------------------------
# Module wrapper
# ---------------------------------------------------------------------------
def tuning_block_module_forward(x, alpha, params, number=0):
    """Pallas equivalent of TuningBlockModule.forward for number < num_blocks.

    Returns (tuning_f * ad_alpha as NHWC, 1 - ad_alpha as (B, C, 1, 1)).
    """
    B, H, W, C = x.shape
    WC = W * C

    # --- gate: constant-fold the bias-free linear chain, evaluate in the wrapper -----
    a1, a2 = params["adapt"][number]
    w_fold = params["ctrl_w1"] @ params["ctrl_w2"] @ params["ctrl_w3"] @ a1 @ a2  # (512,C)
    ad = alpha @ w_fold                                                            # (B, C)
    one_minus = (1.0 - ad).reshape(B, C, 1, 1)

    # --- conv weights: block-Toeplitz fold, dy-stacked along K, bf16 MXU operands ----
    conv0_w, conv1_w = params["tuning"][number]
    big0 = _fold_conv_weight(conv0_w, W).astype(jnp.bfloat16)        # (3*WC, WC)
    big1 = _fold_conv_weight(conv1_w, W).astype(jnp.bfloat16)

    # --- batch stacking: bpr images per grid step stacked into the matmul M dim ------
    n_steps = 2 if (B % 2 == 0 and B >= 2) else 1                    # 2 TCs on v7x
    bpr = B // n_steps
    M = bpr * H

    x_m = x.reshape(n_steps, M, WC)                                  # lane-dense merge
    ad_tiled = jnp.tile(ad, (1, W)).reshape(n_steps, bpr, WC)        # 512 B / image

    # TODO(synk): for production widths on v7x (64 MiB VMEM), single-buffer the
    # constant-index weight inputs (pipeline_mode=pl.Buffered(1)), set vmem_limit_bytes,
    # and replace the (3*WC, WC) block-Toeplitz weights (only ~3/W dense) with a banded /
    # lane-rolled form once W*C grows past ~512.
    out_m = pl.pallas_call(
        functools.partial(_fused_kernel, H=H, bpr=bpr),
        out_shape=jax.ShapeDtypeStruct((n_steps, M, WC), jnp.float32),
        grid=(n_steps,),
        in_specs=[
            pl.BlockSpec((1, bpr, WC), lambda b: (b, 0, 0)),         # per-image gate rows
            pl.BlockSpec((3 * WC, WC), lambda b: (0, 0)),            # conv0 folded (bf16)
            pl.BlockSpec((3 * WC, WC), lambda b: (0, 0)),            # conv1 folded (bf16)
            pl.BlockSpec((1, M, WC), lambda b: (b, 0, 0)),           # stacked images
        ],
        out_specs=pl.BlockSpec((1, M, WC), lambda b: (b, 0, 0)),
        compiler_params=pltpu.CompilerParams(
            dimension_semantics=("parallel",)),                      # steps independent
    )(ad_tiled, big0, big1, x_m)

    out = out_m.reshape(B, H, W, C)
    # TODO(synk): the appended 'sr' branch (conv3x3 + Upsampler/PixelShuffle at index
    # num_blocks) is not implemented; only the TuningBlock branches are.
    return out, one_minus


# ---------------------------------------------------------------------------
# Deterministic parameter init (kaiming_normal(fan_in) * 0.1, all bias-free)
# ---------------------------------------------------------------------------
def init_params(key, channels=8, num_blocks=2):
    def kaiming(k, shape, fan_in):
        return jax.random.normal(k, shape, jnp.float32) * jnp.sqrt(2.0 / fan_in) * 0.1

    keys = jax.random.split(key, 3 + 4 * num_blocks)
    params = {
        "ctrl_w1": kaiming(keys[0], (512, 256), 512),
        "ctrl_w2": kaiming(keys[1], (256, 128), 256),
        "ctrl_w3": kaiming(keys[2], (128, channels), 128),
        "adapt": [],
        "tuning": [],
    }
    idx = 3
    for _ in range(num_blocks):
        a1 = kaiming(keys[idx], (channels, channels), channels)
        a2 = kaiming(keys[idx + 1], (channels, channels), channels)
        w0 = kaiming(keys[idx + 2], (3, 3, channels, channels), 9 * channels)
        w1 = kaiming(keys[idx + 3], (3, 3, channels, channels), 9 * channels)
        params["adapt"].append((a1, a2))
        params["tuning"].append((w0, w1))
        idx += 4
    return params


# ---------------------------------------------------------------------------
# Pure-JAX reference (faithful to the PyTorch module). With bf16_matmul=True the conv
# operands are rounded to bf16 with f32 accumulation — the same precision the kernel's
# MXU matmuls use — giving a tight, order-independent correctness check.
# ---------------------------------------------------------------------------
def _reference(x, alpha, params, number=0, bf16_matmul=False):
    dt = jnp.bfloat16 if bf16_matmul else jnp.float32
    ad = alpha @ params["ctrl_w1"] @ params["ctrl_w2"] @ params["ctrl_w3"]
    a1, a2 = params["adapt"][number]
    ad = ad @ a1 @ a2
    w0, w1 = params["tuning"][number]
    dn = ("NHWC", "HWIO", "NHWC")
    h = lax.conv_general_dilated(x.astype(dt), w0.astype(dt), (1, 1), "SAME",
                                 dimension_numbers=dn,
                                 preferred_element_type=jnp.float32)
    h = jnp.maximum(h, 0.0)
    t = lax.conv_general_dilated(h.astype(dt), w1.astype(dt), (1, 1), "SAME",
                                 dimension_numbers=dn,
                                 preferred_element_type=jnp.float32)
    return t * ad[:, None, None, :], (1.0 - ad).reshape(-1, ad.shape[1], 1, 1)


if __name__ == "__main__":
    B, C, H, W = 4, 8, 16, 16      # W*C = 128 -> one lane width; 2 steps x 2 images each
    num_blocks = 2

    key = jax.random.PRNGKey(0)
    kx, ka, kp = jax.random.split(key, 3)
    x = jax.random.normal(kx, (B, H, W, C), jnp.float32)        # NHWC
    alpha = jax.random.normal(ka, (B, 512), jnp.float32)
    params = init_params(kp, channels=C, num_blocks=num_blocks)

    out, one_minus = tuning_block_module_forward(x, alpha, params, number=0)
    jax.block_until_ready((out, one_minus))

    ref_out_bf16, ref_one = _reference(x, alpha, params, number=0, bf16_matmul=True)
    ref_out_f32, _ = _reference(x, alpha, params, number=0, bf16_matmul=False)

    assert out.shape == (B, H, W, C)
    assert one_minus.shape == (B, C, 1, 1)
    # Tight check against a reference with the same bf16-operand / f32-accum precision.
    assert jnp.allclose(out, ref_out_bf16, rtol=2e-3, atol=1e-6), "conv/scale mismatch"
    # Coarse end-to-end sanity vs. the exact f32 module (expected ~1e-3 rel-L2 from bf16).
    rel_l2 = jnp.linalg.norm(out - ref_out_f32) / jnp.linalg.norm(ref_out_f32)
    assert rel_l2 < 2e-2, f"bf16 rel-L2 error too large: {rel_l2}"
    assert jnp.allclose(one_minus, ref_one, rtol=1e-5, atol=1e-6), "1-ad mismatch"

    print("KERNEL_OK")
</pallas_src>

<mosaic_0001>
module attributes {stable_mosaic.version = 11 : i64} {
  func.func @_fused_kernel(%arg0: i32, %arg1: memref<1x2x128xf32, #tpu.memory_space<vmem>>, %arg2: memref<384x128xbf16, #tpu.memory_space<vmem>>, %arg3: memref<384x128xbf16, #tpu.memory_space<vmem>>, %arg4: memref<1x32x128xf32, #tpu.memory_space<vmem>>, %arg5: memref<1x32x128xf32, #tpu.memory_space<vmem>>) attributes {dimension_semantics = [#tpu.dimension_semantics<parallel>], iteration_bounds = array<i64: 2>, scalar_prefetch = 0 : i64, scratch_operands = 0 : i64, tpu.core_type = #tpu.core_type<tc>, window_params = [{transform_indices = @transform_0, window_bounds = array<i64: 1, 2, 128>}, {pipeline_mode = #tpu.pipeline_mode<synchronous>, transform_indices = @transform_1, window_bounds = array<i64: 384, 128>}, {pipeline_mode = #tpu.pipeline_mode<synchronous>, transform_indices = @transform_2, window_bounds = array<i64: 384, 128>}, {transform_indices = @transform_3, window_bounds = array<i64: 1, 32, 128>}, {transform_indices = @transform_4, window_bounds = array<i64: 1, 32, 128>}]} {
    %c0 = arith.constant 0 : index
    %c0_0 = arith.constant 0 : index
    %c0_1 = arith.constant 0 : index
    %0 = vector.load %arg4[%c0, %c0_0, %c0_1] : memref<1x32x128xf32, #tpu.memory_space<vmem>>, vector<1x32x128xf32>
    %1 = vector.shape_cast %0 : vector<1x32x128xf32> to vector<32x128xf32>
    %2 = tpu.iota {dimensions = array<i32: 0>} : vector<32x128xi32>
    %c16_i32 = arith.constant 16 : i32
    %c0_i32 = arith.constant 0 : i32
    %3 = arith.cmpi eq, %c16_i32, %c0_i32 : i32
    %c1_i32 = arith.constant 1 : i32
    %4 = arith.select %3, %c1_i32, %c16_i32 : i32
    %5 = vector.broadcast %4 : i32 to vector<32x128xi32>
    %6 = arith.remsi %2, %5 : vector<32x128xi32>
    %c0_i32_2 = arith.constant 0 : i32
    %7 = vector.broadcast %c0_i32_2 : i32 to vector<32x128xi32>
    %8 = arith.cmpi ne, %6, %7 : vector<32x128xi32>
    %c0_i32_3 = arith.constant 0 : i32
    %9 = vector.broadcast %c0_i32_3 : i32 to vector<32x128xi32>
    %10 = arith.cmpi slt, %6, %9 : vector<32x128xi32>
    %c0_i32_4 = arith.constant 0 : i32
    %11 = arith.cmpi slt, %4, %c0_i32_4 : i32
    %12 = vector.broadcast %11 : i1 to vector<32x128xi1>
    %13 = vector.broadcast %12 : vector<32x128xi1> to vector<32x128xi1>
    %14 = arith.xori %10, %13 : vector<32x128xi1>
    %15 = arith.andi %14, %8 : vector<32x128xi1>
    %16 = vector.broadcast %4 : i32 to vector<32x128xi32>
    %17 = arith.addi %6, %16 : vector<32x128xi32>
    %18 = arith.select %15, %17, %6 : vector<32x128xi1>, vector<32x128xi32>
    %c0_i32_5 = arith.constant 0 : i32
    %19 = vector.broadcast %c0_i32_5 : i32 to vector<32x128xi32>
    %20 = arith.cmpi ne, %18, %19 : vector<32x128xi32>
    %c15_i32 = arith.constant 15 : i32
    %21 = vector.broadcast %c15_i32 : i32 to vector<32x128xi32>
    %22 = arith.cmpi ne, %18, %21 : vector<32x128xi32>
    %c1_i32_6 = arith.constant 1 : i32
    %23 = tpu.dynamic_rotate %1 by %c1_i32_6 dim 0 : vector<32x128xf32>, i32 -> vector<32x128xf32>
    %cst = arith.constant 0.000000e+00 : f32
    %24 = vector.broadcast %cst : f32 to vector<32x128xf32>
    %25 = arith.select %20, %23, %24 : vector<32x128xi1>, vector<32x128xf32>
    %c31_i32 = arith.constant 31 : i32
    %26 = tpu.dynamic_rotate %1 by %c31_i32 dim 0 : vector<32x128xf32>, i32 -> vector<32x128xf32>
    %cst_7 = arith.constant 0.000000e+00 : f32
    %27 = vector.broadcast %cst_7 : f32 to vector<32x128xf32>
    %28 = arith.select %22, %26, %27 : vector<32x128xi1>, vector<32x128xf32>
    %29 = tpu.concatenate %25, %1, %28 in 1 : vector<32x128xf32>, vector<32x128xf32>, vector<32x128xf32> -> vector<32x384xf32>
    %30 = arith.truncf %29 : vector<32x384xf32> to vector<32x384xbf16>
    %c0_8 = arith.constant 0 : index
    %c0_9 = arith.constant 0 : index
    %31 = vector.load %arg2[%c0_8, %c0_9] : memref<384x128xbf16, #tpu.memory_space<vmem>>, vector<384x128xbf16>
    %cst_10 = arith.constant dense<0.000000e+00> : vector<32x128xf32>
    %32 = tpu.matmul %30, %31, %cst_10 {dimension_numbers = #tpu.dot_dimension_numbers<[1], [0], [0], [1], [0, 0, 1, 1], [], []>} : vector<32x384xbf16>, vector<384x128xbf16>, vector<32x128xf32> -> vector<32x128xf32>
    %cst_11 = arith.constant 0.000000e+00 : f32
    %33 = vector.broadcast %cst_11 : f32 to vector<32x128xf32>
    %34 = arith.maximumf %32, %33 : vector<32x128xf32>
    %c1_i32_12 = arith.constant 1 : i32
    %35 = tpu.dynamic_rotate %34 by %c1_i32_12 dim 0 : vector<32x128xf32>, i32 -> vector<32x128xf32>
    %cst_13 = arith.constant 0.000000e+00 : f32
    %36 = vector.broadcast %cst_13 : f32 to vector<32x128xf32>
    %37 = arith.select %20, %35, %36 : vector<32x128xi1>, vector<32x128xf32>
    %c31_i32_14 = arith.constant 31 : i32
    %38 = tpu.dynamic_rotate %34 by %c31_i32_14 dim 0 : vector<32x128xf32>, i32 -> vector<32x128xf32>
    %cst_15 = arith.constant 0.000000e+00 : f32
    %39 = vector.broadcast %cst_15 : f32 to vector<32x128xf32>
    %40 = arith.select %22, %38, %39 : vector<32x128xi1>, vector<32x128xf32>
    %41 = tpu.concatenate %37, %34, %40 in 1 : vector<32x128xf32>, vector<32x128xf32>, vector<32x128xf32> -> vector<32x384xf32>
    %42 = arith.truncf %41 : vector<32x384xf32> to vector<32x384xbf16>
    %c0_16 = arith.constant 0 : index
    %c0_17 = arith.constant 0 : index
    %43 = vector.load %arg3[%c0_16, %c0_17] : memref<384x128xbf16, #tpu.memory_space<vmem>>, vector<384x128xbf16>
    %cst_18 = arith.constant dense<0.000000e+00> : vector<32x128xf32>
    %44 = tpu.matmul %42, %43, %cst_18 {dimension_numbers = #tpu.dot_dimension_numbers<[1], [0], [0], [1], [0, 0, 1, 1], [], []>} : vector<32x384xbf16>, vector<384x128xbf16>, vector<32x128xf32> -> vector<32x128xf32>
    %c0_19 = arith.constant 0 : index
    %c0_20 = arith.constant 0 : index
    %c0_21 = arith.constant 0 : index
    %45 = vector.load %arg1[%c0_19, %c0_20, %c0_21] : memref<1x2x128xf32, #tpu.memory_space<vmem>>, vector<1x2x128xf32>
    %46 = vector.shape_cast %45 : vector<1x2x128xf32> to vector<2x128xf32>
    %47 = vector.extract_strided_slice %46 {offsets = [0, 0], sizes = [1, 128], strides = [1, 1]} : vector<2x128xf32> to vector<1x128xf32>
    %48 = vector.shape_cast %47 : vector<1x128xf32> to vector<1x128xf32>
    %49 = vector.broadcast %48 : vector<1x128xf32> to vector<16x128xf32>
    %50 = vector.extract_strided_slice %46 {offsets = [1, 0], sizes = [1, 128], strides = [1, 1]} : vector<2x128xf32> to vector<1x128xf32>
    %51 = vector.shape_cast %50 : vector<1x128xf32> to vector<1x128xf32>
    %52 = vector.broadcast %51 : vector<1x128xf32> to vector<16x128xf32>
    %53 = tpu.concatenate %49, %52 in 0 : vector<16x128xf32>, vector<16x128xf32> -> vector<32x128xf32>
    %54 = arith.mulf %44, %53 : vector<32x128xf32>
    %c0_22 = arith.constant 0 : index
    %c0_23 = arith.constant 0 : index
    %c0_24 = arith.constant 0 : index
    %55 = vector.load %arg5[%c0_22, %c0_23, %c0_24] : memref<1x32x128xf32, #tpu.memory_space<vmem>>, vector<1x32x128xf32>
    %56 = vector.shape_cast %55 : vector<1x32x128xf32> to vector<32x128xf32>
    %57 = vector.shape_cast %54 : vector<32x128xf32> to vector<1x32x128xf32>
    tpu.vector_store %arg5[%c0_22, %c0_23, %c0_24], %57 {strides = array<i32>} : memref<1x32x128xf32, #tpu.memory_space<vmem>>, vector<1x32x128xf32>,
    return
  }
  func.func @transform_0(%arg0: i32) -> (i32, i32, i32) {
    %c0_i32 = arith.constant 0 : i32
    %c0_i32_0 = arith.constant 0 : i32
    %c0_i32_1 = arith.constant 0 : i32
    return %arg0, %c0_i32, %c0_i32_0 : i32, i32, i32
  }
  func.func @transform_1(%arg0: i32) -> (i32, i32) {
    %c0_i32 = arith.constant 0 : i32
    %c0_i32_0 = arith.constant 0 : i32
    %c0_i32_1 = arith.constant 0 : i32
    return %c0_i32, %c0_i32_0 : i32, i32
  }
  func.func @transform_2(%arg0: i32) -> (i32, i32) {
    %c0_i32 = arith.constant 0 : i32
    %c0_i32_0 = arith.constant 0 : i32
    %c0_i32_1 = arith.constant 0 : i32
    return %c0_i32, %c0_i32_0 : i32, i32
  }
  func.func @transform_3(%arg0: i32) -> (i32, i32, i32) {
    %c0_i32 = arith.constant 0 : i32
    %c0_i32_0 = arith.constant 0 : i32
    %c0_i32_1 = arith.constant 0 : i32
    return %arg0, %c0_i32, %c0_i32_0 : i32, i32, i32
  }
  func.func @transform_4(%arg0: i32) -> (i32, i32, i32) {
    %c0_i32 = arith.constant 0 : i32
    %c0_i32_0 = arith.constant 0 : i32
    %c0_i32_1 = arith.constant 0 : i32
    return %arg0, %c0_i32, %c0_i32_0 : i32, i32, i32
  }
}

</mosaic_0001>

<llo_original>
// kernel: tpu_custom_call.1
$region0: #{tpu_custom_call.1}
  #allocation0 [shape = 'u32[]', space=smem, size = 0x4, offset = 0x4, fixed_abs, tag = 'smem constant byte address 0x4 - core index']
  #allocation1 [shape = 'u32[144,128]{1,0:T(1,128)}', space=vmem, size = 0x12000, scoped, tag = 'internal scratch']
  %s0 = inlined_call_operand.hbm [shape: f32[2,2,128], index: 0, kind: input, shape index: {}]
  %s1 = inlined_call_operand.hbm [shape: bf16[384,128], index: 1, kind: input, shape index: {}]
  %s2 = inlined_call_operand.hbm [shape: bf16[384,128], index: 2, kind: input, shape index: {}]
  %s3 = inlined_call_operand.hbm [shape: f32[2,32,128], index: 3, kind: input, shape index: {}]
  %s4 = inlined_call_operand.hbm [shape: f32[2,32,128], index: 4, kind: output, shape index: {}]
  %s5 = sld [smem:[#allocation0]]
  $region65: #{tpu_custom_call.1} parent=0
    _
  %s7 = ssub.s32 1, %s5
  %s8 = scalar_select 0, %s7, %s5
  $region1: #{tpu_custom_call.1} parent=0
    #allocation2 [shape = 'u8[2048]{0}', space=vmem, size = 0x800, scoped, tag = 'input window, operand 0']
    #allocation3 [shape = 's32[2]{0}', space=sflag, size = 0x8, scoped, tag = 'scoped memory for tpu_custom_call.1']
    #allocation4 [shape = 's32[2]{0}', space=sflag, size = 0x8, scoped, tag = 'scoped memory for tpu_custom_call.1']
    #allocation5 [shape = 'u8[98304]{0}', space=vmem, size = 0x18000, scoped, tag = 'input window, operand 1, single buffered']
    #allocation6 [shape = 's32[1]{0}', space=sflag, size = 0x4, scoped, tag = 'scoped memory for tpu_custom_call.1']
    #allocation7 [shape = 'u8[98304]{0}', space=vmem, size = 0x18000, scoped, tag = 'input window, operand 2, single buffered']
    #allocation8 [shape = 'u8[32768]{0}', space=vmem, size = 0x8000, scoped, tag = 'input window, operand 3']
    #allocation9 [shape = 's32[2]{0}', space=sflag, size = 0x8, scoped, tag = 'scoped memory for tpu_custom_call.1']
    #allocation10 [shape = 'u8[32768]{0}', space=vmem, size = 0x8000, scoped, tag = 'output window, operand 0']
    %9 = vsyncpa [#allocation3], 0
    %s10 = scalar_lea.sflag [#allocation3], 1
    %11 = vsyncpa %s10, 0
    %12 = vsyncpa [#allocation6], 0
    %13 = vsyncpa [#allocation9], 0
    %s14 = scalar_lea.sflag [#allocation9], 1
    %15 = vsyncpa %s14, 0
    %16 = vsyncpa [#allocation4], 0
    %s17 = scalar_lea.sflag [#allocation4], 1
    %18 = vsyncpa %s17, 0
    loop: start=0, step=1, limit=4
    $region2: #{tpu_custom_call.1} parent=1 // loop_pre_header
      _
    $region3: #{tpu_custom_call.1} parent=1 // loop_header
      %s20 = sphi 0, %s24
      %p21 = scmp.ge.s32.totalorder %s20, 4
      %s30 = sphi 0, %s32
      %s33 = sphi 0, %s30
      %s34 = sphi 0, %s33
      %s50 = sphi 0, %s34
      %s54 = sphi 0, %s54
      %s56 = sphi 0, %s54
      %s57 = sphi 0, %s56
      %s71 = sphi 0, %s57
      %s75 = sphi 0, %s75
      %s77 = sphi 0, %s75
      %s78 = sphi 0, %s77
      %s92 = sphi 0, %s78
      %s98 = sphi 0, %s100
      %s101 = sphi 0, %s98
      %s102 = sphi 0, %s101
      %s118 = sphi 0, %s102
      %s124 = sphi 0, %s126
      %s127 = sphi 0, %s124
      %s128 = sphi 0, %s127
      %s144 = sphi 0, %s128
    $region4: #{tpu_custom_call.1} parent=1 // loop_header_branch
      %23 = sbr.rel (%p21) target = $region8
    $region5: #{tpu_custom_call.1} parent=1 // loop_body
      %s25 = ssub.s32 %s20, 1
      %s26 = ssub.s32 %s20, 2
      %s27 = sadd.s32 %s20, 1
      %s28 = ssub.s32 %s20, %s27
      %p29 = scmp.eq.s32.totalorder %s28, 0
      %s31 = sadd.s32 %s30, 1
      %s32 = scalar_select %p29, %s30, %s31
      %p35 = pneg %p29
      %p36 = scmp.eq.s32.totalorder %s20, 1
      %p37 = por %p35, %p36
      %p38 = scmp.ne.s32.totalorder %s30, %s33
      %p39 = scmp.eq.s32.totalorder %s20, 0
      %p40 = por %p38, %p39
      %p41 = scmp.ne.s32.totalorder %s30, %s33
      %p42 = scmp.eq.s32.totalorder %s25, 1
      %p43 = por %p41, %p42
      %p44 = scmp.ne.s32.totalorder %s33, %s34
      %p45 = scmp.eq.s32.totalorder %s25, 0
      %p46 = por %p44, %p45
      %p47 = scmp.ne.s32.totalorder %s33, %s34
      %p48 = scmp.eq.s32.totalorder %s26, 1
      %p49 = por %p47, %p48
      %p51 = scmp.ne.s32.totalorder %s34, %s50
      %p52 = scmp.eq.s32.totalorder %s26, 0
      %p53 = por %p51, %p52
      %s55 = sadd.s32 %s54, 1
      %p58 = scmp.eq.s32.totalorder %s20, 1
      %p59 = scmp.ne.s32.totalorder %s54, %s56
      %p60 = scmp.eq.s32.totalorder %s20, 0
      %p61 = por %p59, %p60
      %p62 = scmp.ne.s32.totalorder %s54, %s56
      %p63 = scmp.eq.s32.totalorder %s25, 1
      %p64 = por %p62, %p63
      %p65 = scmp.ne.s32.totalorder %s56, %s57
      %p66 = scmp.eq.s32.totalorder %s25, 0
      %p67 = por %p65, %p66
      %p68 = scmp.ne.s32.totalorder %s56, %s57
      %p69 = scmp.eq.s32.totalorder %s26, 1
      %p70 = por %p68, %p69
      %p72 = scmp.ne.s32.totalorder %s57, %s71
      %p73 = scmp.eq.s32.totalorder %s26, 0
      %p74 = por %p72, %p73
      %s76 = sadd.s32 %s75, 1
      %p79 = scmp.eq.s32.totalorder %s20, 1
      %p80 = scmp.ne.s32.totalorder %s75, %s77
      %p81 = scmp.eq.s32.totalorder %s20, 0
      %p82 = por %p80, %p81
      %p83 = scmp.ne.s32.totalorder %s75, %s77
      %p84 = scmp.eq.s32.totalorder %s25, 1
      %p85 = por %p83, %p84
      %p86 = scmp.ne.s32.totalorder %s77, %s78
      %p87 = scmp.eq.s32.totalorder %s25, 0
      %p88 = por %p86, %p87
      %p89 = scmp.ne.s32.totalorder %s77, %s78
      %p90 = scmp.eq.s32.totalorder %s26, 1
      %p91 = por %p89, %p90
      %p93 = scmp.ne.s32.totalorder %s78, %s92
      %p94 = scmp.eq.s32.totalorder %s26, 0
      %p95 = por %p93, %p94
      %s96 = ssub.s32 %s20, %s27
      %p97 = scmp.eq.s32.totalorder %s96, 0
      %s99 = sadd.s32 %s98, 1
      %s100 = scalar_select %p97, %s98, %s99
      %p103 = pneg %p97
      %p104 = scmp.eq.s32.totalorder %s20, 1
      %p105 = por %p103, %p104
      %p106 = scmp.ne.s32.totalorder %s98, %s101
      %p107 = scmp.eq.s32.totalorder %s20, 0
      %p108 = por %p106, %p107
      %p109 = scmp.ne.s32.totalorder %s98, %s101
      %p110 = scmp.eq.s32.totalorder %s25, 1
      %p111 = por %p109, %p110
      %p112 = scmp.ne.s32.totalorder %s101, %s102
      %p113 = scmp.eq.s32.totalorder %s25, 0
      %p114 = por %p112, %p113
      %p115 = scmp.ne.s32.totalorder %s101, %s102
      %p116 = scmp.eq.s32.totalorder %s26, 1
      %p117 = por %p115, %p116
      %p119 = scmp.ne.s32.totalorder %s102, %s118
      %p120 = scmp.eq.s32.totalorder %s26, 0
      %p121 = por %p119, %p120
      %s122 = ssub.s32 %s20, %s27
      %p123 = scmp.eq.s32.totalorder %s122, 0
      %s125 = sadd.s32 %s124, 1
      %s126 = scalar_select %p123, %s124, %s125
      %p129 = pneg %p123
      %p130 = scmp.eq.s32.totalorder %s20, 1
      %p131 = por %p129, %p130
      %p132 = scmp.ne.s32.totalorder %s124, %s127
      %p133 = scmp.eq.s32.totalorder %s20, 0
      %p134 = por %p132, %p133
      %p135 = scmp.ne.s32.totalorder %s124, %s127
      %p136 = scmp.eq.s32.totalorder %s25, 1
      %p137 = por %p135, %p136
      %p138 = scmp.ne.s32.totalorder %s127, %s128
      %p139 = scmp.eq.s32.totalorder %s25, 0
      %p140 = por %p138, %p139
      %p141 = scmp.ne.s32.totalorder %s127, %s128
      %p142 = scmp.eq.s32.totalorder %s26, 1
      %p143 = por %p141, %p142
      %p145 = scmp.ne.s32.totalorder %s128, %s144
      %p146 = scmp.eq.s32.totalorder %s26, 0
      %p147 = por %p145, %p146
      %p148 = scmp.le.s32.totalorder 1, %s20
      %p149 = scmp.lt.s32.totalorder %s20, 3
      %p150 = pnand %p148, %p149
      %p151 = pneg %p150
      // Predicated region
      $region9: #{tpu_custom_call.1} parent=5 // pred_check
        _
      $region10: #{tpu_custom_call.1} parent=5 // pred_check_branch
        %153 = sbr.rel (%p150) target = $region12
      $region11: #{tpu_custom_call.1} parent=5 // pred_region
        %s154 = ssub.s32 %s20, 1
        // Predicated region
        $region13: #{tpu_custom_call.1} parent=11 // pred_check
          %p155 = pneg %p67
        $region14: #{tpu_custom_call.1} parent=11 // pred_check_branch
          %157 = sbr.rel (%p155) target = $region16
        $region15: #{tpu_custom_call.1} parent=11 // pred_region
          %s159 = ssub.s32 3072, 3072
          %160 = vsyncadd [#allocation6], %s159
          %s161 = sshll.u32 [#allocation5], 4
          %s162 = int_to_ptr.vmem [resolvable:$true] %s161
          %167 = dma.hbm_to_vmem [thread:$0]  %s1, 3072, %s162, [#allocation6], 64, 64, 4
        $region16: #{tpu_custom_call.1} parent=11 // pred_fallthru
          _
        // Predicated region
        $region17: #{tpu_custom_call.1} parent=11 // pred_check
          %p168 = pneg %p88
        $region18: #{tpu_custom_call.1} parent=11 // pred_check_branch
          %170 = sbr.rel (%p168) target = $region20
        $region19: #{tpu_custom_call.1} parent=11 // pred_region
          %s172 = ssub.s32 3072, 3072
          %173 = vsyncadd [#allocation6], %s172
          %s174 = sshll.u32 [#allocation7], 4
          %s175 = int_to_ptr.vmem [resolvable:$true] %s174
          %180 = dma.hbm_to_vmem [thread:$0]  %s2, 3072, %s175, [#allocation6], 64, 64, 4
        $region20: #{tpu_custom_call.1} parent=11 // pred_fallthru
          _
      $region12: #{tpu_custom_call.1} parent=5 // pred_fallthru
        _
      %p181 = scmp.lt.s32.totalorder %s20, 2
      // Predicated region
      $region21: #{tpu_custom_call.1} parent=5 // pred_check
        %p182 = pneg %p181
      $region22: #{tpu_custom_call.1} parent=5 // pred_check_branch
        %184 = sbr.rel (%p182) target = $region24
      $region23: #{tpu_custom_call.1} parent=5 // pred_region
        // Predicated region
        $region25: #{tpu_custom_call.1} parent=23 // pred_check
          %p185 = pneg %p40
        $region26: #{tpu_custom_call.1} parent=23 // pred_check_branch
          %187 = sbr.rel (%p185) target = $region28
        $region27: #{tpu_custom_call.1} parent=23 // pred_region
          %s188 = sand.u32 %s30, 1
          %s189 = scalar_lea.sflag [#allocation3], %s188
          %s190 = sand.u32 %s30, 1
          %s191 = smul.addr %s190, 2
          %s192 = scalar_lea.vmem [#allocation2], %s191
          %s194 = ssub.s32 32, 32
          %195 = vsyncadd %s189, %s194
          %s196 = smul.addr %s20, 32
          %s197 = scalar_lea.hbm %s0, %s196
          %s199 = sshll.u32 %s192, 4
          %s200 = int_to_ptr.vmem [resolvable:$true] %s199
          %202 = dma.hbm_to_vmem [thread:$0]  %s197, 32, %s200, %s189
        $region28: #{tpu_custom_call.1} parent=23 // pred_fallthru
          _
        // Predicated region
        $region29: #{tpu_custom_call.1} parent=23 // pred_check
          %p203 = pneg %p108
        $region30: #{tpu_custom_call.1} parent=23 // pred_check_branch
          %205 = sbr.rel (%p203) target = $region32
        $region31: #{tpu_custom_call.1} parent=23 // pred_region
          %s206 = sand.u32 %s98, 1
          %s207 = scalar_lea.sflag [#allocation9], %s206
          %s208 = sand.u32 %s98, 1
          %s209 = smul.addr %s208, 32
          %s210 = scalar_lea.vmem [#allocation8], %s209
          %s212 = ssub.s32 512, 512
          %213 = vsyncadd %s207, %s212
          %s214 = smul.addr %s20, 4
          %s215 = smul.addr %s214, 128
          %s216 = scalar_lea.hbm %s3, %s215
          %s217 = sshll.u32 %s210, 4
          %s218 = int_to_ptr.vmem [resolvable:$true] %s217
          %223 = dma.hbm_to_vmem [thread:$0]  %s216, 512, %s218, %s207, 128, 128, 8
        $region32: #{tpu_custom_call.1} parent=23 // pred_fallthru
          _
      $region24: #{tpu_custom_call.1} parent=5 // pred_fallthru
        _
      %p224 = scmp.le.s32.totalorder 1, %s20
      %p225 = scmp.lt.s32.totalorder %s20, 3
      %p226 = pnand %p224, %p225
      %p227 = pneg %p226
      // Predicated region
      $region33: #{tpu_custom_call.1} parent=5 // pred_check
        _
      $region34: #{tpu_custom_call.1} parent=5 // pred_check_branch
        %229 = sbr.rel (%p226) target = $region36
      $region35: #{tpu_custom_call.1} parent=5 // pred_region
        %s230 = ssub.s32 %s20, 1
        %s231 = sand.u32 %s33, 1
        %s232 = scalar_lea.sflag [#allocation3], %s231
        %s233 = sand.u32 %s33, 1
        %s234 = smul.addr %s233, 2
        %s235 = scalar_lea.vmem [#allocation2], %s234
        // Predicated region
        $region37: #{tpu_custom_call.1} parent=35 // pred_check
          %p236 = pneg %p46
        $region38: #{tpu_custom_call.1} parent=35 // pred_check_branch
          %238 = sbr.rel (%p236) target = $region40
        $region39: #{tpu_custom_call.1} parent=35 // pred_region
          %239 = dma.done %s232, 32
        $region40: #{tpu_custom_call.1} parent=35 // pred_fallthru
          _
        // Predicated region
        $region41: #{tpu_custom_call.1} parent=35 // pred_check
          %p240 = pneg %p67
        $region42: #{tpu_custom_call.1} parent=35 // pred_check_branch
          %242 = sbr.rel (%p240) target = $region44
        $region43: #{tpu_custom_call.1} parent=35 // pred_region
          %243 = dma.done [#allocation6], 3072
        $region44: #{tpu_custom_call.1} parent=35 // pred_fallthru
          _
        // Predicated region
        $region45: #{tpu_custom_call.1} parent=35 // pred_check
          %p244 = pneg %p88
        $region46: #{tpu_custom_call.1} parent=35 // pred_check_branch
          %246 = sbr.rel (%p244) target = $region48
        $region47: #{tpu_custom_call.1} parent=35 // pred_region
          %247 = dma.done [#allocation6], 3072
        $region48: #{tpu_custom_call.1} parent=35 // pred_fallthru
          _
        %s248 = sand.u32 %s101, 1
        %s249 = scalar_lea.sflag [#allocation9], %s248
        %s250 = sand.u32 %s101, 1
        %s251 = smul.addr %s250, 32
        %s252 = scalar_lea.vmem [#allocation8], %s251
        // Predicated region
        $region49: #{tpu_custom_call.1} parent=35 // pred_check
          %p253 = pneg %p114
        $region50: #{tpu_custom_call.1} parent=35 // pred_check_branch
          %255 = sbr.rel (%p253) target = $region52
        $region51: #{tpu_custom_call.1} parent=35 // pred_region
          %256 = dma.done %s249, 512
        $region52: #{tpu_custom_call.1} parent=35 // pred_fallthru
          _
        %s257 = sand.u32 %s33, 1
        %s258 = scalar_lea.sflag [#allocation3], %s257
        %s259 = sand.u32 %s33, 1
        %s260 = smul.addr %s259, 2
        %s261 = scalar_lea.vmem [#allocation2], %s260
        %p262 = pneg %p46
        %p263 = pneg %p43
        %p264 = pneg %p67
        %p265 = pneg %p64
        %p266 = pneg %p88
        %p267 = pneg %p85
        %s268 = sand.u32 %s101, 1
        %s269 = scalar_lea.sflag [#allocation9], %s268
        %s270 = sand.u32 %s101, 1
        %s271 = smul.addr %s270, 32
        %s272 = scalar_lea.vmem [#allocation8], %s271
        %p273 = pneg %p114
        %p274 = pneg %p111
        %p275 = pneg %p140
        %p276 = pneg %p137
        %s277 = sand.u32 %s127, 1
        %s278 = scalar_lea.sflag [#allocation4], %s277
        %s279 = sand.u32 %s127, 1
        %s280 = smul.addr %s279, 32
        %s281 = scalar_lea.vmem [#allocation10], %s280
        %v283 = vld [vmem:[%s252] sm:$0xff]
        %v284 = vld [vmem:[%s252 + $0x8] sm:$0xff]
        %v285 = vld [vmem:[%s252 + $0x10] sm:$0xff]
        %v286 = vld [vmem:[%s252 + $0x18] sm:$0xff]
        %v287 = vlaneseq
        %v288 = vshrl.u32 %v287, 7
        %v289 = vadd.s32 %v288, 8
        %v290 = vadd.s32 %v288, 16
        %v291 = vadd.s32 %v288, 24
        %vm292 = vcmp.lt.s32.totalorder %v288, 0
        %v293 = vsub.s32 0, %v288
        %v294 = vsel %vm292, %v293, %v288
        %v295 = vshrl.u32 %v294, 4
        %v296 = vand.u32 %v294, 15
        %v297 = vsub.s32 0, %v296
        %v298 = vsel %vm292, %v297, %v296
        %vm299 = vcmp.lt.s32.totalorder %v289, 0
        %v300 = vsub.s32 0, %v289
        %v301 = vsel %vm299, %v300, %v289
        %v302 = vshrl.u32 %v301, 4
        %v303 = vand.u32 %v301, 15
        %v304 = vsub.s32 0, %v303
        %v305 = vsel %vm299, %v304, %v303
        %vm306 = vcmp.lt.s32.totalorder %v290, 0
        %v307 = vsub.s32 0, %v290
        %v308 = vsel %vm306, %v307, %v290
        %v309 = vshrl.u32 %v308, 4
        %v310 = vand.u32 %v308, 15
        %v311 = vsub.s32 0, %v310
        %v312 = vsel %vm306, %v311, %v310
        %vm313 = vcmp.lt.s32.totalorder %v291, 0
        %v314 = vsub.s32 0, %v291
        %v315 = vsel %vm313, %v314, %v291
        %v316 = vshrl.u32 %v315, 4
        %v317 = vand.u32 %v315, 15
        %v318 = vsub.s32 0, %v317
        %v319 = vsel %vm313, %v318, %v317
        %vm320 = vcmp.ne.s32.totalorder %v298, 0
        %vm321 = vcmp.ne.s32.totalorder %v305, 0
        %vm322 = vcmp.ne.s32.totalorder %v312, 0
        %vm323 = vcmp.ne.s32.totalorder %v319, 0
        %vm324 = vcmp.lt.s32.totalorder %v298, 0
        %vm325 = vcmp.lt.s32.totalorder %v305, 0
        %vm326 = vcmp.lt.s32.totalorder %v312, 0
        %vm327 = vcmp.lt.s32.totalorder %v319, 0
        %vm328 = vmand %vm324, %vm320
        %vm329 = vmand %vm325, %vm321
        %vm330 = vmand %vm326, %vm322
        %vm331 = vmand %vm327, %vm323
        %v332 = vadd.s32 %v298, 16
        %v333 = vadd.s32 %v305, 16
        %v334 = vadd.s32 %v312, 16
        %v335 = vadd.s32 %v319, 16
        %v336 = vsel %vm328, %v332, %v298
        %v337 = vsel %vm329, %v333, %v305
        %v338 = vsel %vm330, %v334, %v312
        %v339 = vsel %vm331, %v335, %v319
        %vm340 = vcmp.ne.s32.totalorder %v336, 0
        %vm341 = vcmp.ne.s32.totalorder %v337, 0
        %vm342 = vcmp.ne.s32.totalorder %v338, 0
        %vm343 = vcmp.ne.s32.totalorder %v339, 0
        %vm344 = vcmp.ne.s32.totalorder %v336, 15
        %vm345 = vcmp.ne.s32.totalorder %v337, 15
        %vm346 = vcmp.ne.s32.totalorder %v338, 15
        %vm347 = vcmp.ne.s32.totalorder %v339, 15
        %v348 = vrot.slane %v283, 7
        %v349 = vrot.slane %v284, 7
        %v350 = vrot.slane %v285, 7
        %v351 = vrot.slane %v286, 7
        %vm352 = vcmp.lt.s32.totalorder %v288, 1
        %v353 = vsel %vm352, %v350, %v351
        %v354 = vsel %vm352, %v349, %v350
        %v355 = vsel %vm352, %v348, %v349
        %v356 = vsel %vm352, %v351, %v348
        %v357 = vsel %vm340, %v356, 0.0
        %v358 = vsel %vm341, %v355, 0.0
        %v359 = vsel %vm342, %v354, 0.0
        %v360 = vsel %vm343, %v353, 0.0
        %v361 = vrot.slane %v283, 1
        %v362 = vrot.slane %v284, 1
        %v363 = vrot.slane %v285, 1
        %v364 = vrot.slane %v286, 1
        %vm365 = vcmp.lt.s32.totalorder %v288, 7
        %v366 = vsel %vm365, %v363, %v364
        %v367 = vsel %vm365, %v362, %v363
        %v368 = vsel %vm365, %v361, %v362
        %v369 = vsel %vm365, %v364, %v361
        %v370 = vsel %vm344, %v368, 0.0
        %v371 = vsel %vm345, %v367, 0.0
        %v372 = vsel %vm346, %v366, 0.0
        %v373 = vsel %vm347, %v369, 0.0
        %v374 = vpack.c.bf16 %v358, %v357
        %v375 = vpack.c.bf16 %v284, %v283
        %v376 = vpack.c.bf16 %v371, %v370
        %v377 = vpack.c.bf16 %v360, %v359
        %v378 = vpack.c.bf16 %v286, %v285
        %v379 = vpack.c.bf16 %v373, %v372
        %v380 = vld [vmem:[#allocation5] sm:$0xf]
        %v381 = vld [vmem:[#allocation5 + $0x4] sm:$0xf]
        %v382 = vld [vmem:[#allocation5 + $0x8] sm:$0xf]
        %v383 = vld [vmem:[#allocation5 + $0xc] sm:$0xf]
        %v384 = vld [vmem:[#allocation5 + $0x10] sm:$0xf]
        %v385 = vld [vmem:[#allocation5 + $0x14] sm:$0xf]
        %v386 = vld [vmem:[#allocation5 + $0x18] sm:$0xf]
        %v387 = vld [vmem:[#allocation5 + $0x1c] sm:$0xf]
        %v388 = vld [vmem:[#allocation5 + $0x20] sm:$0xf]
        %v389 = vld [vmem:[#allocation5 + $0x24] sm:$0xf]
        %v390 = vld [vmem:[#allocation5 + $0x28] sm:$0xf]
        %v391 = vld [vmem:[#allocation5 + $0x2c] sm:$0xf]
        %v392 = vld [vmem:[#allocation5 + $0x30] sm:$0xf]
        %v393 = vld [vmem:[#allocation5 + $0x34] sm:$0xf]
        %v394 = vld [vmem:[#allocation5 + $0x38] sm:$0xf]
        %v395 = vld [vmem:[#allocation5 + $0x3c] sm:$0xf]
        %v396 = vld [vmem:[#allocation5 + $0x40] sm:$0xf]
        %v397 = vld [vmem:[#allocation5 + $0x44] sm:$0xf]
        %v398 = vld [vmem:[#allocation5 + $0x48] sm:$0xf]
        %v399 = vld [vmem:[#allocation5 + $0x4c] sm:$0xf]
        %v400 = vld [vmem:[#allocation5 + $0x50] sm:$0xf]
        %v401 = vld [vmem:[#allocation5 + $0x54] sm:$0xf]
        %v402 = vld [vmem:[#allocation5 + $0x58] sm:$0xf]
        %v403 = vld [vmem:[#allocation5 + $0x5c] sm:$0xf]
        %v404 = vld [vmem:[#allocation5 + $0x60] sm:$0xf]
        %v405 = vld [vmem:[#allocation5 + $0x64] sm:$0xf]
        %v406 = vld [vmem:[#allocation5 + $0x68] sm:$0xf]
        %v407 = vld [vmem:[#allocation5 + $0x6c] sm:$0xf]
        %v408 = vld [vmem:[#allocation5 + $0x70] sm:$0xf]
        %v409 = vld [vmem:[#allocation5 + $0x74] sm:$0xf]
        %v410 = vld [vmem:[#allocation5 + $0x78] sm:$0xf]
        %v411 = vld [vmem:[#allocation5 + $0x7c] sm:$0xf]
        %v412 = vld [vmem:[#allocation5 + $0x80] sm:$0xf]
        %v413 = vld [vmem:[#allocation5 + $0x84] sm:$0xf]
        %v414 = vld [vmem:[#allocation5 + $0x88] sm:$0xf]
        %v415 = vld [vmem:[#allocation5 + $0x8c] sm:$0xf]
        %v416 = vld [vmem:[#allocation5 + $0x90] sm:$0xf]
        %v417 = vld [vmem:[#allocation5 + $0x94] sm:$0xf]
        %v418 = vld [vmem:[#allocation5 + $0x98] sm:$0xf]
        %v419 = vld [vmem:[#allocation5 + $0x9c] sm:$0xf]
        %v420 = vld [vmem:[#allocation5 + $0xa0] sm:$0xf]
        %v421 = vld [vmem:[#allocation5 + $0xa4] sm:$0xf]
        %v422 = vld [vmem:[#allocation5 + $0xa8] sm:$0xf]
        %v423 = vld [vmem:[#allocation5 + $0xac] sm:$0xf]
        %v424 = vld [vmem:[#allocation5 + $0xb0] sm:$0xf]
        %v425 = vld [vmem:[#allocation5 + $0xb4] sm:$0xf]
        %v426 = vld [vmem:[#allocation5 + $0xb8] sm:$0xf]
        %v427 = vld [vmem:[#allocation5 + $0xbc] sm:$0xf]
        %v476 = vunpack.c.l.b16 %v380
        %v477 = vunpack.c.l.b16 %v381
        %v478 = vunpack.c.l.b16 %v382
        %v479 = vunpack.c.l.b16 %v383
        %v480 = vunpack.c.l.b16 %v384
        %v481 = vunpack.c.l.b16 %v385
        %v482 = vunpack.c.l.b16 %v386
        %v483 = vunpack.c.l.b16 %v387
        %v484 = vunpack.c.l.b16 %v388
        %v485 = vunpack.c.l.b16 %v389
        %v486 = vunpack.c.l.b16 %v390
        %v487 = vunpack.c.l.b16 %v391
        %v488 = vunpack.c.l.b16 %v392
        %v489 = vunpack.c.l.b16 %v393
        %v490 = vunpack.c.l.b16 %v394
        %v491 = vunpack.c.l.b16 %v395
        %v492 = vunpack.c.l.b16 %v396
        %v493 = vunpack.c.l.b16 %v397
        %v494 = vunpack.c.l.b16 %v398
        %v495 = vunpack.c.l.b16 %v399
        %v496 = vunpack.c.l.b16 %v400
        %v497 = vunpack.c.l.b16 %v401
        %v498 = vunpack.c.l.b16 %v402
        %v499 = vunpack.c.l.b16 %v403
        %v500 = vunpack.c.l.b16 %v404
        %v501 = vunpack.c.l.b16 %v405
        %v502 = vunpack.c.l.b16 %v406
        %v503 = vunpack.c.l.b16 %v407
        %v504 = vunpack.c.l.b16 %v408
        %v505 = vunpack.c.l.b16 %v409
        %v506 = vunpack.c.l.b16 %v410
        %v507 = vunpack.c.l.b16 %v411
        %v508 = vunpack.c.l.b16 %v412
        %v509 = vunpack.c.l.b16 %v413
        %v510 = vunpack.c.l.b16 %v414
        %v511 = vunpack.c.l.b16 %v415
        %v512 = vunpack.c.l.b16 %v416
        %v513 = vunpack.c.l.b16 %v417
        %v514 = vunpack.c.l.b16 %v418
        %v515 = vunpack.c.l.b16 %v419
        %v516 = vunpack.c.l.b16 %v420
        %v517 = vunpack.c.l.b16 %v421
        %v518 = vunpack.c.l.b16 %v422
        %v519 = vunpack.c.l.b16 %v423
        %v520 = vunpack.c.l.b16 %v424
        %v521 = vunpack.c.l.b16 %v425
        %v522 = vunpack.c.l.b16 %v426
        %v523 = vunpack.c.l.b16 %v427
        %v524 = vpack.c.b16 %v477, %v476
        %v525 = vpack.c.b16 %v479, %v478
        %v526 = vpack.c.b16 %v481, %v480
        %v527 = vpack.c.b16 %v483, %v482
        %v528 = vpack.c.b16 %v485, %v484
        %v529 = vpack.c.b16 %v487, %v486
        %v530 = vpack.c.b16 %v489, %v488
        %v531 = vpack.c.b16 %v491, %v490
        %v532 = vpack.c.b16 %v493, %v492
        %v533 = vpack.c.b16 %v495, %v494
        %v534 = vpack.c.b16 %v497, %v496
        %v535 = vpack.c.b16 %v499, %v498
        %v536 = vpack.c.b16 %v501, %v500
        %v537 = vpack.c.b16 %v503, %v502
        %v538 = vpack.c.b16 %v505, %v504
        %v539 = vpack.c.b16 %v507, %v506
        %v540 = vpack.c.b16 %v509, %v508
        %v541 = vpack.c.b16 %v511, %v510
        %v542 = vpack.c.b16 %v513, %v512
        %v543 = vpack.c.b16 %v515, %v514
        %v544 = vpack.c.b16 %v517, %v516
        %v545 = vpack.c.b16 %v519, %v518
        %v546 = vpack.c.b16 %v521, %v520
        %v547 = vpack.c.b16 %v523, %v522
        %572 = vmatprep.subr.bf16.mxu0 0
        %573 = vmatpush1.bf16.msra.mxu0 %v524
        %574 = vmatprep.subr.bf16.mxu0 0
        %575 = vmatpush1.bf16.msra.mxu0 %v525
        %576 = vmatprep.subr.bf16.mxu0 0
        %577 = vmatpush1.bf16.msra.mxu0 %v526
        %578 = vmatprep.subr.bf16.mxu0 0
        %579 = vmatpush1.bf16.msra.mxu0 %v527
        %580 = vmatprep.subr.bf16.mxu0 0
        %581 = vmatpush1.bf16.msra.mxu0 %v528
        %582 = vmatprep.subr.bf16.mxu0 0
        %583 = vmatpush1.bf16.msra.mxu0 %v529
        %584 = vmatprep.subr.bf16.mxu0 0
        %585 = vmatpush1.bf16.msra.mxu0 %v530
        %586 = vmatprep.subr.bf16.mxu0 0
        %587 = vmatpush1.bf16.msra.mxu0 %v531
        %588 = vmatprep.subr.bf16.mxu0 0
        %589 = vmatpush1.bf16.msra.mxu0 %v532
        %590 = vmatprep.subr.bf16.mxu0 0
        %591 = vmatpush1.bf16.msra.mxu0 %v533
        %592 = vmatprep.subr.bf16.mxu0 0
        %593 = vmatpush1.bf16.msra.mxu0 %v534
        %594 = vmatprep.subr.bf16.mxu0 0
        %595 = vmatpush1.bf16.msra.mxu0 %v535
        %596 = vmatprep.subr.bf16.mxu0 0
        %597 = vmatpush1.bf16.msra.mxu0 %v536
        %598 = vmatprep.subr.bf16.mxu0 0
        %599 = vmatpush1.bf16.msra.mxu0 %v537
        %600 = vmatprep.subr.bf16.mxu0 0
        %601 = vmatpush1.bf16.msra.mxu0 %v538
        %602 = vmatprep.subr.bf16.mxu0 0
        %603 = vmatpush1.bf16.msra.mxu0 %v539
        %604 = vmatprep.mubr.bf16.mxu0 %v375
        %605 = vmatmul.mubr.bf16.gmra.mrb[0].mxu0 %v374
        %v606 = vpop.f32.mrb[0].mxu0
        %v607 = vadd.f32 0.0, %v606
        %v608 = vpop.f32.mrb[0].mxu0
        %v609 = vpop.f32.mrb[0].mxu0
        %v610 = vadd.f32 0.0, %v609
        %v611 = vpop.f32.mrb[0].mxu0
        %612 = vmatprep.mubr.bf16.mxu0 %v378
        %613 = vmatmul.mubr.bf16.gmra.mrb[0].mxu0 %v377
        %v614 = vpop.f32.mrb[0].mxu0
        %v615 = vadd.f32 0.0, %v614
        %v616 = vpop.f32.mrb[0].mxu0
        %v617 = vpop.f32.mrb[0].mxu0
        %v618 = vadd.f32 0.0, %v617
        %v619 = vpop.f32.mrb[0].mxu0
        %620 = vdwg.mxu0
        %621 = vmatprep.subr.bf16.mxu0 0
        %622 = vmatpush1.bf16.msra.mxu0 %v540
        %623 = vmatprep.subr.bf16.mxu0 0
        %624 = vmatpush1.bf16.msra.mxu0 %v541
        %625 = vmatprep.subr.bf16.mxu0 0
        %626 = vmatpush1.bf16.msra.mxu0 %v542
        %627 = vmatprep.subr.bf16.mxu0 0
        %628 = vmatpush1.bf16.msra.mxu0 %v543
        %629 = vmatprep.subr.bf16.mxu0 0
        %630 = vmatpush1.bf16.msra.mxu0 %v544
        %631 = vmatprep.subr.bf16.mxu0 0
        %632 = vmatpush1.bf16.msra.mxu0 %v545
        %633 = vmatprep.subr.bf16.mxu0 0
        %634 = vmatpush1.bf16.msra.mxu0 %v546
        %635 = vmatprep.subr.bf16.mxu0 0
        %636 = vmatpush1.bf16.msra.mxu0 %v547
        %637 = vmatprep.subr.bf16.mxu0 0
        %638 = vmatpush1.bf16.msra.mxu0 0
        %639 = vmatprep.subr.bf16.mxu0 0
        %640 = vmatpush1.bf16.msra.mxu0 0
        %641 = vmatprep.subr.bf16.mxu0 0
        %642 = vmatpush1.bf16.msra.mxu0 0
        %643 = vmatprep.subr.bf16.mxu0 0
        %644 = vmatpush1.bf16.msra.mxu0 0
        %645 = vmatprep.subr.bf16.mxu0 0
        %646 = vmatpush1.bf16.msra.mxu0 0
        %647 = vmatprep.subr.bf16.mxu0 0
        %648 = vmatpush1.bf16.msra.mxu0 0
        %649 = vmatprep.subr.bf16.mxu0 0
        %650 = vmatpush1.bf16.msra.mxu0 0
        %651 = vmatprep.subr.bf16.mxu0 0
        %652 = vmatpush1.bf16.msra.mxu0 0
        %653 = vmatprep.mubr.bf16.mxu0 0
        %654 = vmatmul.mubr.bf16.gmra.mrb[0].mxu0 %v376
        %v655 = vpop.f32.mrb[0].mxu0
        %v656 = vadd.f32 %v607, %v655
        %v657 = vpop.f32.mrb[0].mxu0
        %v658 = vpop.f32.mrb[0].mxu0
        %v659 = vadd.f32 %v610, %v658
        %v660 = vpop.f32.mrb[0].mxu0
        %661 = vmatprep.mubr.bf16.mxu0 0
        %662 = vmatmul.mubr.bf16.gmra.mrb[0].mxu0 %v379
        %v663 = vpop.f32.mrb[0].mxu0
        %v664 = vadd.f32 %v615, %v663
        %v665 = vpop.f32.mrb[0].mxu0
        %v666 = vpop.f32.mrb[0].mxu0
        %v667 = vadd.f32 %v618, %v666
        %v668 = vpop.f32.mrb[0].mxu0
        %669 = vdwg.mxu0
        %v670 = vmax.f32 %v656, 0.0
        %v671 = vmax.f32 %v659, 0.0
        %v672 = vmax.f32 %v664, 0.0
        %v673 = vmax.f32 %v667, 0.0
        %v674 = vrot.slane %v670, 7
        %v675 = vrot.slane %v671, 7
        %v676 = vrot.slane %v672, 7
        %v677 = vrot.slane %v673, 7
        %v678 = vsel %vm352, %v676, %v677
        %v679 = vsel %vm352, %v675, %v676
        %v680 = vsel %vm352, %v674, %v675
        %v681 = vsel %vm352, %v677, %v674
        %v682 = vsel %vm340, %v681, 0.0
        %v683 = vsel %vm341, %v680, 0.0
        %v684 = vsel %vm342, %v679, 0.0
        %v685 = vsel %vm343, %v678, 0.0
        %v686 = vrot.slane %v670, 1
        %v687 = vrot.slane %v671, 1
        %v688 = vrot.slane %v672, 1
        %v689 = vrot.slane %v673, 1
        %v690 = vsel %vm365, %v688, %v689
        %v691 = vsel %vm365, %v687, %v688
        %v692 = vsel %vm365, %v686, %v687
        %v693 = vsel %vm365, %v689, %v686
        %v694 = vsel %vm344, %v692, 0.0
        %v695 = vsel %vm345, %v691, 0.0
        %v696 = vsel %vm346, %v690, 0.0
        %v697 = vsel %vm347, %v693, 0.0
        %v698 = vpack.c.bf16 %v683, %v682
        %v699 = vpack.c.bf16 %v671, %v670
        %v700 = vpack.c.bf16 %v695, %v694
        %v701 = vpack.c.bf16 %v685, %v684
        %v702 = vpack.c.bf16 %v673, %v672
        %v703 = vpack.c.bf16 %v697, %v696
        %v704 = vld [vmem:[#allocation7] sm:$0xf]
        %v705 = vld [vmem:[#allocation7 + $0x4] sm:$0xf]
        %v706 = vld [vmem:[#allocation7 + $0x8] sm:$0xf]
        %v707 = vld [vmem:[#allocation7 + $0xc] sm:$0xf]
        %v708 = vld [vmem:[#allocation7 + $0x10] sm:$0xf]
        %v709 = vld [vmem:[#allocation7 + $0x14] sm:$0xf]
        %v710 = vld [vmem:[#allocation7 + $0x18] sm:$0xf]
        %v711 = vld [vmem:[#allocation7 + $0x1c] sm:$0xf]
        %v712 = vld [vmem:[#allocation7 + $0x20] sm:$0xf]
        %v713 = vld [vmem:[#allocation7 + $0x24] sm:$0xf]
        %v714 = vld [vmem:[#allocation7 + $0x28] sm:$0xf]
        %v715 = vld [vmem:[#allocation7 + $0x2c] sm:$0xf]
        %v716 = vld [vmem:[#allocation7 + $0x30] sm:$0xf]
        %v717 = vld [vmem:[#allocation7 + $0x34] sm:$0xf]
        %v718 = vld [vmem:[#allocation7 + $0x38] sm:$0xf]
        %v719 = vld [vmem:[#allocation7 + $0x3c] sm:$0xf]
        %v720 = vld [vmem:[#allocation7 + $0x40] sm:$0xf]
        %v721 = vld [vmem:[#allocation7 + $0x44] sm:$0xf]
        %v722 = vld [vmem:[#allocation7 + $0x48] sm:$0xf]
        %v723 = vld [vmem:[#allocation7 + $0x4c] sm:$0xf]
        %v724 = vld [vmem:[#allocation7 + $0x50] sm:$0xf]
        %v725 = vld [vmem:[#allocation7 + $0x54] sm:$0xf]
        %v726 = vld [vmem:[#allocation7 + $0x58] sm:$0xf]
        %v727 = vld [vmem:[#allocation7 + $0x5c] sm:$0xf]
        %v728 = vld [vmem:[#allocation7 + $0x60] sm:$0xf]
        %v729 = vld [vmem:[#allocation7 + $0x64] sm:$0xf]
        %v730 = vld [vmem:[#allocation7 + $0x68] sm:$0xf]
        %v731 = vld [vmem:[#allocation7 + $0x6c] sm:$0xf]
        %v732 = vld [vmem:[#allocation7 + $0x70] sm:$0xf]
        %v733 = vld [vmem:[#allocation7 + $0x74] sm:$0xf]
        %v734 = vld [vmem:[#allocation7 + $0x78] sm:$0xf]
        %v735 = vld [vmem:[#allocation7 + $0x7c] sm:$0xf]
        %v736 = vld [vmem:[#allocation7 + $0x80] sm:$0xf]
        %v737 = vld [vmem:[#allocation7 + $0x84] sm:$0xf]
        %v738 = vld [vmem:[#allocation7 + $0x88] sm:$0xf]
        %v739 = vld [vmem:[#allocation7 + $0x8c] sm:$0xf]
        %v740 = vld [vmem:[#allocation7 + $0x90] sm:$0xf]
        %v741 = vld [vmem:[#allocation7 + $0x94] sm:$0xf]
        %v742 = vld [vmem:[#allocation7 + $0x98] sm:$0xf]
        %v743 = vld [vmem:[#allocation7 + $0x9c] sm:$0xf]
        %v744 = vld [vmem:[#allocation7 + $0xa0] sm:$0xf]
        %v745 = vld [vmem:[#allocation7 + $0xa4] sm:$0xf]
        %v746 = vld [vmem:[#allocation7 + $0xa8] sm:$0xf]
        %v747 = vld [vmem:[#allocation7 + $0xac] sm:$0xf]
        %v748 = vld [vmem:[#allocation7 + $0xb0] sm:$0xf]
        %v749 = vld [vmem:[#allocation7 + $0xb4] sm:$0xf]
        %v750 = vld [vmem:[#allocation7 + $0xb8] sm:$0xf]
        %v751 = vld [vmem:[#allocation7 + $0xbc] sm:$0xf]
        %v800 = vunpack.c.l.b16 %v704
        %v801 = vunpack.c.l.b16 %v705
        %v802 = vunpack.c.l.b16 %v706
        %v803 = vunpack.c.l.b16 %v707
        %v804 = vunpack.c.l.b16 %v708
        %v805 = vunpack.c.l.b16 %v709
        %v806 = vunpack.c.l.b16 %v710
        %v807 = vunpack.c.l.b16 %v711
        %v808 = vunpack.c.l.b16 %v712
        %v809 = vunpack.c.l.b16 %v713
        %v810 = vunpack.c.l.b16 %v714
        %v811 = vunpack.c.l.b16 %v715
        %v812 = vunpack.c.l.b16 %v716
        %v813 = vunpack.c.l.b16 %v717
        %v814 = vunpack.c.l.b16 %v718
        %v815 = vunpack.c.l.b16 %v719
        %v816 = vunpack.c.l.b16 %v720
        %v817 = vunpack.c.l.b16 %v721
        %v818 = vunpack.c.l.b16 %v722
        %v819 = vunpack.c.l.b16 %v723
        %v820 = vunpack.c.l.b16 %v724
        %v821 = vunpack.c.l.b16 %v725
        %v822 = vunpack.c.l.b16 %v726
        %v823 = vunpack.c.l.b16 %v727
        %v824 = vunpack.c.l.b16 %v728
        %v825 = vunpack.c.l.b16 %v729
        %v826 = vunpack.c.l.b16 %v730
        %v827 = vunpack.c.l.b16 %v731
        %v828 = vunpack.c.l.b16 %v732
        %v829 = vunpack.c.l.b16 %v733
        %v830 = vunpack.c.l.b16 %v734
        %v831 = vunpack.c.l.b16 %v735
        %v832 = vunpack.c.l.b16 %v736
        %v833 = vunpack.c.l.b16 %v737
        %v834 = vunpack.c.l.b16 %v738
        %v835 = vunpack.c.l.b16 %v739
        %v836 = vunpack.c.l.b16 %v740
        %v837 = vunpack.c.l.b16 %v741
        %v838 = vunpack.c.l.b16 %v742
        %v839 = vunpack.c.l.b16 %v743
        %v840 = vunpack.c.l.b16 %v744
        %v841 = vunpack.c.l.b16 %v745
        %v842 = vunpack.c.l.b16 %v746
        %v843 = vunpack.c.l.b16 %v747
        %v844 = vunpack.c.l.b16 %v748
        %v845 = vunpack.c.l.b16 %v749
        %v846 = vunpack.c.l.b16 %v750
        %v847 = vunpack.c.l.b16 %v751
        %v848 = vpack.c.b16 %v801, %v800
        %v849 = vpack.c.b16 %v803, %v802
        %v850 = vpack.c.b16 %v805, %v804
        %v851 = vpack.c.b16 %v807, %v806
        %v852 = vpack.c.b16 %v809, %v808
        %v853 = vpack.c.b16 %v811, %v810
        %v854 = vpack.c.b16 %v813, %v812
        %v855 = vpack.c.b16 %v815, %v814
        %v856 = vpack.c.b16 %v817, %v816
        %v857 = vpack.c.b16 %v819, %v818
        %v858 = vpack.c.b16 %v821, %v820
        %v859 = vpack.c.b16 %v823, %v822
        %v860 = vpack.c.b16 %v825, %v824
        %v861 = vpack.c.b16 %v827, %v826
        %v862 = vpack.c.b16 %v829, %v828
        %v863 = vpack.c.b16 %v831, %v830
        %v864 = vpack.c.b16 %v833, %v832
        %v865 = vpack.c.b16 %v835, %v834
        %v866 = vpack.c.b16 %v837, %v836
        %v867 = vpack.c.b16 %v839, %v838
        %v868 = vpack.c.b16 %v841, %v840
        %v869 = vpack.c.b16 %v843, %v842
        %v870 = vpack.c.b16 %v845, %v844
        %v871 = vpack.c.b16 %v847, %v846
        %896 = vmatprep.subr.bf16.mxu0 0
        %897 = vmatpush1.bf16.msra.mxu0 %v848
        %898 = vmatprep.subr.bf16.mxu0 0
        %899 = vmatpush1.bf16.msra.mxu0 %v849
        %900 = vmatprep.subr.bf16.mxu0 0
        %901 = vmatpush1.bf16.msra.mxu0 %v850
        %902 = vmatprep.subr.bf16.mxu0 0
        %903 = vmatpush1.bf16.msra.mxu0 %v851
        %904 = vmatprep.subr.bf16.mxu0 0
        %905 = vmatpush1.bf16.msra.mxu0 %v852
        %906 = vmatprep.subr.bf16.mxu0 0
        %907 = vmatpush1.bf16.msra.mxu0 %v853
        %908 = vmatprep.subr.bf16.mxu0 0
        %909 = vmatpush1.bf16.msra.mxu0 %v854
        %910 = vmatprep.subr.bf16.mxu0 0
        %911 = vmatpush1.bf16.msra.mxu0 %v855
        %912 = vmatprep.subr.bf16.mxu0 0
        %913 = vmatpush1.bf16.msra.mxu0 %v856
        %914 = vmatprep.subr.bf16.mxu0 0
        %915 = vmatpush1.bf16.msra.mxu0 %v857
        %916 = vmatprep.subr.bf16.mxu0 0
        %917 = vmatpush1.bf16.msra.mxu0 %v858
        %918 = vmatprep.subr.bf16.mxu0 0
        %919 = vmatpush1.bf16.msra.mxu0 %v859
        %920 = vmatprep.subr.bf16.mxu0 0
        %921 = vmatpush1.bf16.msra.mxu0 %v860
        %922 = vmatprep.subr.bf16.mxu0 0
        %923 = vmatpush1.bf16.msra.mxu0 %v861
        %924 = vmatprep.subr.bf16.mxu0 0
        %925 = vmatpush1.bf16.msra.mxu0 %v862
        %926 = vmatprep.subr.bf16.mxu0 0
        %927 = vmatpush1.bf16.msra.mxu0 %v863
        %928 = vmatprep.mubr.bf16.mxu0 %v699
        %929 = vmatmul.mubr.bf16.gmra.mrb[0].mxu0 %v698
        %v930 = vpop.f32.mrb[0].mxu0
        %v931 = vadd.f32 0.0, %v930
        %v932 = vpop.f32.mrb[0].mxu0
        %v933 = vpop.f32.mrb[0].mxu0
        %v934 = vadd.f32 0.0, %v933
        %v935 = vpop.f32.mrb[0].mxu0
        %936 = vmatprep.mubr.bf16.mxu0 %v702
        %937 = vmatmul.mubr.bf16.gmra.mrb[0].mxu0 %v701
        %v938 = vpop.f32.mrb[0].mxu0
        %v939 = vadd.f32 0.0, %v938
        %v940 = vpop.f32.mrb[0].mxu0
        %v941 = vpop.f32.mrb[0].mxu0
        %v942 = vadd.f32 0.0, %v941
        %v943 = vpop.f32.mrb[0].mxu0
        %944 = vdwg.mxu0
        %945 = vmatprep.subr.bf16.mxu0 0
        %946 = vmatpush1.bf16.msra.mxu0 %v864
        %947 = vmatprep.subr.bf16.mxu0 0
        %948 = vmatpush1.bf16.msra.mxu0 %v865
        %949 = vmatprep.subr.bf16.mxu0 0
        %950 = vmatpush1.bf16.msra.mxu0 %v866
        %951 = vmatprep.subr.bf16.mxu0 0
        %952 = vmatpush1.bf16.msra.mxu0 %v867
        %953 = vmatprep.subr.bf16.mxu0 0
        %954 = vmatpush1.bf16.msra.mxu0 %v868
        %955 = vmatprep.subr.bf16.mxu0 0
        %956 = vmatpush1.bf16.msra.mxu0 %v869
        %957 = vmatprep.subr.bf16.mxu0 0
        %958 = vmatpush1.bf16.msra.mxu0 %v870
        %959 = vmatprep.subr.bf16.mxu0 0
        %960 = vmatpush1.bf16.msra.mxu0 %v871
        %961 = vmatprep.subr.bf16.mxu0 0
        %962 = vmatpush1.bf16.msra.mxu0 0
        %963 = vmatprep.subr.bf16.mxu0 0
        %964 = vmatpush1.bf16.msra.mxu0 0
        %965 = vmatprep.subr.bf16.mxu0 0
        %966 = vmatpush1.bf16.msra.mxu0 0
        %967 = vmatprep.subr.bf16.mxu0 0
        %968 = vmatpush1.bf16.msra.mxu0 0
        %969 = vmatprep.subr.bf16.mxu0 0
        %970 = vmatpush1.bf16.msra.mxu0 0
        %971 = vmatprep.subr.bf16.mxu0 0
        %972 = vmatpush1.bf16.msra.mxu0 0
        %973 = vmatprep.subr.bf16.mxu0 0
        %974 = vmatpush1.bf16.msra.mxu0 0
        %975 = vmatprep.subr.bf16.mxu0 0
        %976 = vmatpush1.bf16.msra.mxu0 0
        %977 = vmatprep.mubr.bf16.mxu0 0
        %978 = vmatmul.mubr.bf16.gmra.mrb[0].mxu0 %v700
        %v979 = vpop.f32.mrb[0].mxu0
        %v980 = vadd.f32 %v931, %v979
        %v981 = vpop.f32.mrb[0].mxu0
        %v982 = vpop.f32.mrb[0].mxu0
        %v983 = vadd.f32 %v934, %v982
        %v984 = vpop.f32.mrb[0].mxu0
        %985 = vmatprep.mubr.bf16.mxu0 0
        %986 = vmatmul.mubr.bf16.gmra.mrb[0].mxu0 %v703
        %v987 = vpop.f32.mrb[0].mxu0
        %v988 = vadd.f32 %v939, %v987
        %v989 = vpop.f32.mrb[0].mxu0
        %v990 = vpop.f32.mrb[0].mxu0
        %v991 = vadd.f32 %v942, %v990
        %v992 = vpop.f32.mrb[0].mxu0
        %993 = vdwg.mxu0
        %v994 = vld [vmem:[%s235] sm:$0x3]
        %v995 = vlaneseq
        %v996 = vshrl.u32 %v995, 7
        %v997 = vsub.s32 0, %v996
        %v998 = vrot.slane %v994, %v997
        %v999 = vlaneseq
        %v1000 = vshrl.u32 %v999, 7
        %v1001 = vsub.s32 1, %v1000
        %v1002 = vrot.slane %v994, %v1001
        %v1003 = vmul.f32 %v980, %v998
        %v1004 = vmul.f32 %v983, %v998
        %v1005 = vmul.f32 %v988, %v1002
        %v1006 = vmul.f32 %v991, %v1002
        %1007 = vst [vmem:[%s281] sm:$0xff] %v1003
        %1008 = vst [vmem:[%s281 + $0x8] sm:$0xff] %v1004
        %1009 = vst [vmem:[%s281 + $0x10] sm:$0xff] %v1005
        %1010 = vst [vmem:[%s281 + $0x18] sm:$0xff] %v1006
        %s1011 = sand.u32 %s127, 1
        %s1012 = scalar_lea.sflag [#allocation4], %s1011
        %s1013 = sand.u32 %s127, 1
        %s1014 = smul.addr %s1013, 32
        %s1015 = scalar_lea.vmem [#allocation10], %s1014
        // Predicated region
        $region53: #{tpu_custom_call.1} parent=35 // pred_check
          %p1016 = pneg %p137
        $region54: #{tpu_custom_call.1} parent=35 // pred_check_branch
          %1018 = sbr.rel (%p1016) target = $region56
        $region55: #{tpu_custom_call.1} parent=35 // pred_region
          %s1020 = ssub.s32 512, 512
          %1021 = vsyncadd %s1012, %s1020
          %s1022 = smul.addr %s25, 4
          %s1023 = smul.addr %s1022, 128
          %s1024 = scalar_lea.hbm %s4, %s1023
          %s1025 = sshll.u32 %s1015, 4
          %s1026 = int_to_ptr.vmem [resolvable:$true] %s1025
          %1031 = dma.vmem_to_hbm [thread:$0]  %s1026, 512, %s1024, %s1012, 128, 128, 8
        $region56: #{tpu_custom_call.1} parent=35 // pred_fallthru
          _
      $region36: #{tpu_custom_call.1} parent=5 // pred_fallthru
        _
      %p1032 = scmp.le.s32.totalorder 2, %s20
      // Predicated region
      $region57: #{tpu_custom_call.1} parent=5 // pred_check
        %p1033 = pneg %p1032
      $region58: #{tpu_custom_call.1} parent=5 // pred_check_branch
        %1035 = sbr.rel (%p1033) target = $region60
      $region59: #{tpu_custom_call.1} parent=5 // pred_region
        %s1036 = ssub.s32 %s20, 2
        // Predicated region
        $region61: #{tpu_custom_call.1} parent=59 // pred_check
          %p1037 = pneg %p143
        $region62: #{tpu_custom_call.1} parent=59 // pred_check_branch
          %1039 = sbr.rel (%p1037) target = $region64
        $region63: #{tpu_custom_call.1} parent=59 // pred_region
          %s1040 = sand.u32 %s128, 1
          %s1041 = scalar_lea.sflag [#allocation4], %s1040
          %s1042 = sand.u32 %s128, 1
          %s1043 = smul.addr %s1042, 32
          %s1044 = scalar_lea.vmem [#allocation10], %s1043
          %1045 = dma.done %s1041, 512
        $region64: #{tpu_custom_call.1} parent=59 // pred_fallthru
          _
      $region60: #{tpu_custom_call.1} parent=5 // pred_fallthru
        _
    $region6: #{tpu_custom_call.1} parent=1 // loop_footer
      %s24 = sadd.s32 1, %s20
    $region7: #{tpu_custom_call.1} parent=1 // loop_footer_branch
      %19 = sbr.rel target = $region3
    $region8: #{tpu_custom_call.1} parent=1 // loop_exit
      _
    %1046 = vsyncpa [#allocation3], 1
    %s1047 = scalar_lea.sflag [#allocation3], 1
    %1048 = vsyncpa %s1047, 1
    %1049 = vsyncpa [#allocation6], 1
    %1050 = vsyncpa [#allocation9], 1
    %s1051 = scalar_lea.sflag [#allocation9], 1
    %1052 = vsyncpa %s1051, 1
    %1053 = vsyncpa [#allocation4], 1
    %s1054 = scalar_lea.sflag [#allocation4], 1
    %1055 = vsyncpa %s1054, 1

</llo_original>
